<compile_context>
chip_gen: v5e
topology: v5e:2x2
jax: 0.10.0
libtpu: 0.0.40
codegen_flags: <defaults>
</compile_context>

<pallas_src>
import functools

import jax
import jax.numpy as jnp
from jax.experimental import pallas as pl
from jax.experimental.pallas import tpu as pltpu


def _round_up(x, mult):
    return ((x + mult - 1) // mult) * mult


def _mdpp_loss_kernel(feat_ref, proto_ref, tgt_ref, out_ref, *, m, inv_t):
    t = pl.program_id(1)

    # Zero the per-split accumulator (output block is resident across the
    # inner "arbitrary" axis).
    @pl.when(t == 0)
    def _init():
        out_ref[...] = jnp.zeros_like(out_ref)

    # --- row L2 normalize: x / max(||x||, 1e-12) == x * rsqrt(max(||x||^2, 1e-24))
    feat = feat_ref[...]                                        # (tn, c_pad) f32
    sumsq = jnp.sum(feat * feat, axis=1, keepdims=True)
    feat = feat * jax.lax.rsqrt(jnp.maximum(sumsq, 1e-24))

    # --- einsum('nc,mc->nm') on the MXU (contract on C).  Prototypes arrive
    # already in the matmul dtype (f32 or bf16); accumulate in f32.
    fp = jax.lax.dot_general(
        feat.astype(proto_ref.dtype), proto_ref[...],
        (((1,), (1,)), ((), ())),
        preferred_element_type=jnp.float32)                     # (tn, m_pad) f32

    # --- temperature-scaled log-softmax restricted to the m real prototype
    # columns (padded columns masked to -inf so they carry no softmax mass;
    # the pairwise block of the original concat is all -inf and elided).
    logits = fp * jnp.float32(inv_t)
    col = jax.lax.broadcasted_iota(jnp.int32, logits.shape, 1)  # (tn, m_pad)
    logits = jnp.where(col < m, logits, -jnp.inf)

    row_max = jnp.max(logits, axis=1, keepdims=True)            # finite
    sumexp = jnp.sum(jnp.exp(logits - row_max), axis=1, keepdims=True)
    lse = jnp.log(sumexp) + row_max                             # (tn, 1)

    # --- NLL gather: target = domain*num_classes + label (precomputed in the
    # wrapper); padded rows carry target = -1 and are masked out of the sum.
    tgt = tgt_ref[...]                                          # (tn, 1) int32
    onehot = col == tgt
    tgt_logit = jnp.sum(jnp.where(onehot, logits, 0.0), axis=1, keepdims=True)

    nll = jnp.where(tgt >= 0, lse - tgt_logit, 0.0)             # (tn, 1)
    out_ref[...] += jnp.sum(nll, axis=0, keepdims=True)[None, :, :]


def multi_domain_prototype_p_loss(feature, prototypes, labels, domain_labels, *,
                                  num_classes, temperature, block_n=512,
                                  matmul_dtype=jnp.float32, num_splits=2):
    """Pallas TPU implementation of MultiDomainPrototypePLoss.forward."""
    n, c = feature.shape
    protos = prototypes.reshape(-1, prototypes.shape[-1]).astype(jnp.float32)
    m = protos.shape[0]

    # Lane-dense padding of the contraction dim (C) and logit dim (M).
    c_pad = _round_up(c, 128)
    m_pad = _round_up(m, 128)

    # Row tiling: TN rows per step (multiple of 8), 2-way split across
    # TensorCores on v7x (neutral on v5e/v6e).
    tn = min(_round_up(block_n, 8), _round_up(n, 8))
    total_tiles = pl.cdiv(n, tn)
    splits = max(1, min(num_splits, total_tiles))
    tiles_per_split = pl.cdiv(total_tiles, splits)
    n_pad = splits * tiles_per_split * tn

    feat_p = jnp.zeros((n_pad, c_pad), jnp.float32)
    feat_p = feat_p.at[:n, :c].set(feature.astype(jnp.float32))
    protos_p = jnp.zeros((m_pad, c_pad), matmul_dtype)
    protos_p = protos_p.at[:m, :c].set(protos.astype(matmul_dtype))

    targets = (domain_labels.astype(jnp.int32) * num_classes
               + labels.astype(jnp.int32)).reshape(n, 1)
    targets_p = jnp.full((n_pad, 1), -1, jnp.int32).at[:n, :].set(targets)

    kernel = functools.partial(_mdpp_loss_kernel, m=m,
                               inv_t=float(1.0 / float(temperature)))

    partial_sums = pl.pallas_call(
        kernel,
        out_shape=jax.ShapeDtypeStruct((splits, 1, 1), jnp.float32),
        grid=(splits, tiles_per_split),
        in_specs=[
            # feature tile: streamed / double-buffered over rows
            pl.BlockSpec((tn, c_pad), lambda s, t: (s * tiles_per_split + t, 0)),
            # prototypes: resident across all grid steps
            pl.BlockSpec((m_pad, c_pad), lambda s, t: (0, 0)),
            # precomputed targets tile
            pl.BlockSpec((tn, 1), lambda s, t: (s * tiles_per_split + t, 0)),
        ],
        out_specs=pl.BlockSpec((1, 1, 1), lambda s, t: (s, 0, 0)),
        compiler_params=pltpu.CompilerParams(
            dimension_semantics=("parallel", "arbitrary")),
    )(feat_p, protos_p, targets_p)

    return jnp.sum(partial_sums) / jnp.float32(n)


def _reference_loss(feature, prototypes, labels, domain_labels,
                    *, num_classes, temperature):
    """Pure-JAX reference mirroring the PyTorch code exactly (1-D labels)."""
    feat = feature / jnp.maximum(
        jnp.linalg.norm(feature, axis=1, keepdims=True), 1e-12)
    protos = prototypes.reshape(-1, prototypes.shape[-1])
    fp = jnp.einsum('nc,mc->nm', feat, protos)
    pw = jnp.einsum('ic,jc->ij', feat, feat)
    mask_neg = jnp.logical_or(jnp.not_equal(labels, labels),
                              jnp.not_equal(domain_labels, domain_labels))
    l_neg = pw * mask_neg.astype(pw.dtype)
    l_neg = jnp.where(l_neg < 1e-6, -jnp.inf, l_neg)
    logits = jnp.concatenate([fp, l_neg], axis=1)
    logp = jax.nn.log_softmax(logits / temperature, axis=1)
    tgt = domain_labels * num_classes + labels
    return -jnp.mean(logp[jnp.arange(feat.shape[0]), tgt])


if __name__ == "__main__":
    num_classes = 4
    num_domains = 2
    temperature = 0.5
    N, C = 8, 32

    key = jax.random.PRNGKey(0)
    k1, k2, k3, k4 = jax.random.split(key, 4)
    feature = jax.random.normal(k1, (N, C), dtype=jnp.float32)
    # Deterministically initialized "prototypes" parameter (num_domains, num_classes, C)
    prototypes = jax.random.normal(k2, (num_domains, num_classes, C),
                                   dtype=jnp.float32)
    labels = jax.random.randint(k3, (N,), 0, num_classes, dtype=jnp.int32)
    domain_labels = jax.random.randint(k4, (N,), 0, num_domains,
                                       dtype=jnp.int32)

    ref = _reference_loss(feature, prototypes, labels, domain_labels,
                          num_classes=num_classes, temperature=temperature)
    ref = jax.block_until_ready(ref)

    # f32 MXU path (exact match to the reference).
    loss32 = multi_domain_prototype_p_loss(
        feature, prototypes, labels, domain_labels,
        num_classes=num_classes, temperature=temperature,
        matmul_dtype=jnp.float32)
    loss32 = jax.block_until_ready(loss32)
    assert jnp.isfinite(loss32), f"f32 loss not finite: {loss32}"
    assert jnp.allclose(loss32, ref, atol=1e-5, rtol=1e-5), (loss32, ref)

    # bf16-input MXU path (v6e/v7x fast path; accumulation stays f32, so only
    # a bf16 rounding of already-normalized inputs -> loose tolerance).
    loss16 = multi_domain_prototype_p_loss(
        feature, prototypes, labels, domain_labels,
        num_classes=num_classes, temperature=temperature,
        matmul_dtype=jnp.bfloat16)
    loss16 = jax.block_until_ready(loss16)
    assert jnp.isfinite(loss16), f"bf16 loss not finite: {loss16}"
    assert jnp.allclose(loss16, ref, atol=2e-1), (loss16, ref)

    print("KERNEL_OK")
</pallas_src>

<mosaic_0001>
module attributes {stable_mosaic.version = 11 : i64} {
  func.func @_mdpp_loss_kernel(%arg0: i32, %arg1: i32, %arg2: memref<8x128xf32, #tpu.memory_space<vmem>>, %arg3: memref<128x128xf32, #tpu.memory_space<vmem>>, %arg4: memref<8x1xi32, #tpu.memory_space<vmem>>, %arg5: memref<1x1x1xf32, #tpu.memory_space<vmem>>) attributes {dimension_semantics = [#tpu.dimension_semantics<parallel>, #tpu.dimension_semantics<arbitrary>], iteration_bounds = array<i64: 1, 1>, scalar_prefetch = 0 : i64, scratch_operands = 0 : i64, tpu.core_type = #tpu.core_type<tc>, window_params = [{transform_indices = @transform_0, window_bounds = array<i64: 8, 128>}, {pipeline_mode = #tpu.pipeline_mode<synchronous>, transform_indices = @transform_1, window_bounds = array<i64: 128, 128>}, {transform_indices = @transform_2, window_bounds = array<i64: 8, 1>}, {transform_indices = @transform_3, window_bounds = array<i64: 1, 1, 1>}]} {
    %c0_i32 = arith.constant 0 : i32
    %0 = arith.cmpi eq, %arg1, %c0_i32 : i32
    %1 = arith.extui %0 : i1 to i32
    %c0_i32_0 = arith.constant 0 : i32
    %2 = arith.cmpi ne, %1, %c0_i32_0 : i32
    scf.if %2 {
      %cst_23 = arith.constant 0.000000e+00 : f32
      %48 = vector.broadcast %cst_23 : f32 to vector<1x1x1xf32>
      %c0_24 = arith.constant 0 : index
      %c0_25 = arith.constant 0 : index
      %c0_26 = arith.constant 0 : index
      %49 = vector.load %arg5[%c0_24, %c0_25, %c0_26] : memref<1x1x1xf32, #tpu.memory_space<vmem>>, vector<1x1x1xf32>
      tpu.vector_store %arg5[%c0_24, %c0_25, %c0_26], %48 {strides = array<i32>} : memref<1x1x1xf32, #tpu.memory_space<vmem>>, vector<1x1x1xf32>,
    } else {
    }
    %c0 = arith.constant 0 : index
    %c0_1 = arith.constant 0 : index
    %3 = vector.load %arg2[%c0, %c0_1] : memref<8x128xf32, #tpu.memory_space<vmem>>, vector<8x128xf32>
    %4 = arith.mulf %3, %3 : vector<8x128xf32>
    %cst = arith.constant dense<0.000000e+00> : vector<8xf32>
    %5 = vector.multi_reduction <add>, %4, %cst [1] : vector<8x128xf32> to vector<8xf32>
    %6 = vector.shape_cast %5 : vector<8xf32> to vector<8x1xf32>
    %cst_2 = arith.constant 1.000000e-24 : f32
    %7 = vector.broadcast %cst_2 : f32 to vector<8x1xf32>
    %8 = arith.maximumf %6, %7 : vector<8x1xf32>
    %9 = math.rsqrt %8 : vector<8x1xf32>
    %10 = vector.broadcast %9 : vector<8x1xf32> to vector<8x128xf32>
    %11 = arith.mulf %3, %10 : vector<8x128xf32>
    %c0_3 = arith.constant 0 : index
    %c0_4 = arith.constant 0 : index
    %12 = vector.load %arg3[%c0_3, %c0_4] : memref<128x128xf32, #tpu.memory_space<vmem>>, vector<128x128xf32>
    %cst_5 = arith.constant dense<0.000000e+00> : vector<8x128xf32>
    %13 = tpu.matmul %11, %12, %cst_5 {dimension_numbers = #tpu.dot_dimension_numbers<[1], [1], [0], [0], [0, 0, 1, 0], [], []>} : vector<8x128xf32>, vector<128x128xf32>, vector<8x128xf32> -> vector<8x128xf32>
    %cst_6 = arith.constant 2.000000e+00 : f32
    %14 = vector.broadcast %cst_6 : f32 to vector<8x128xf32>
    %15 = arith.mulf %13, %14 : vector<8x128xf32>
    %16 = tpu.iota {dimensions = array<i32: 1>} : vector<8x128xi32>
    %c8_i32 = arith.constant 8 : i32
    %17 = vector.broadcast %c8_i32 : i32 to vector<8x128xi32>
    %18 = arith.cmpi slt, %16, %17 : vector<8x128xi32>
    %cst_7 = arith.constant 0xFF800000 : f32
    %19 = vector.broadcast %cst_7 : f32 to vector<8x128xf32>
    %20 = arith.select %18, %15, %19 : vector<8x128xi1>, vector<8x128xf32>
    %cst_8 = arith.constant dense<0xFF800000> : vector<8xf32>
    %21 = vector.multi_reduction <maximumf>, %20, %cst_8 [1] : vector<8x128xf32> to vector<8xf32>
    %22 = vector.shape_cast %21 : vector<8xf32> to vector<8x1xf32>
    %23 = vector.broadcast %22 : vector<8x1xf32> to vector<8x128xf32>
    %24 = arith.subf %20, %23 : vector<8x128xf32>
    %25 = math.exp %24 : vector<8x128xf32>
    %cst_9 = arith.constant dense<0.000000e+00> : vector<8xf32>
    %26 = vector.multi_reduction <add>, %25, %cst_9 [1] : vector<8x128xf32> to vector<8xf32>
    %27 = vector.shape_cast %26 : vector<8xf32> to vector<8x1xf32>
    %28 = math.log %27 : vector<8x1xf32>
    %29 = arith.addf %28, %22 : vector<8x1xf32>
    %c0_10 = arith.constant 0 : index
    %c0_11 = arith.constant 0 : index
    %30 = vector.load %arg4[%c0_10, %c0_11] : memref<8x1xi32, #tpu.memory_space<vmem>>, vector<8x1xi32>
    %31 = vector.broadcast %30 : vector<8x1xi32> to vector<8x128xi32>
    %32 = arith.cmpi eq, %16, %31 : vector<8x128xi32>
    %cst_12 = arith.constant 0.000000e+00 : f32
    %33 = vector.broadcast %cst_12 : f32 to vector<8x128xf32>
    %34 = arith.select %32, %20, %33 : vector<8x128xi1>, vector<8x128xf32>
    %cst_13 = arith.constant dense<0.000000e+00> : vector<8xf32>
    %35 = vector.multi_reduction <add>, %34, %cst_13 [1] : vector<8x128xf32> to vector<8xf32>
    %36 = vector.shape_cast %35 : vector<8xf32> to vector<8x1xf32>
    %c0_i32_14 = arith.constant 0 : i32
    %37 = vector.broadcast %c0_i32_14 : i32 to vector<8x1xi32>
    %38 = arith.cmpi sge, %30, %37 : vector<8x1xi32>
    %39 = arith.subf %29, %36 : vector<8x1xf32>
    %cst_15 = arith.constant 0.000000e+00 : f32
    %40 = vector.broadcast %cst_15 : f32 to vector<8x1xf32>
    %41 = arith.select %38, %39, %40 : vector<8x1xi1>, vector<8x1xf32>
    %c0_16 = arith.constant 0 : index
    %c0_17 = arith.constant 0 : index
    %c0_18 = arith.constant 0 : index
    %42 = vector.load %arg5[%c0_16, %c0_17, %c0_18] : memref<1x1x1xf32, #tpu.memory_space<vmem>>, vector<1x1x1xf32>
    %cst_19 = arith.constant dense<0.000000e+00> : vector<1xf32>
    %43 = vector.multi_reduction <add>, %41, %cst_19 [0] : vector<8x1xf32> to vector<1xf32>
    %44 = vector.shape_cast %43 : vector<1xf32> to vector<1x1xf32>
    %45 = vector.shape_cast %44 : vector<1x1xf32> to vector<1x1x1xf32>
    %46 = arith.addf %42, %45 : vector<1x1x1xf32>
    %c0_20 = arith.constant 0 : index
    %c0_21 = arith.constant 0 : index
    %c0_22 = arith.constant 0 : index
    %47 = vector.load %arg5[%c0_20, %c0_21, %c0_22] : memref<1x1x1xf32, #tpu.memory_space<vmem>>, vector<1x1x1xf32>
    tpu.vector_store %arg5[%c0_20, %c0_21, %c0_22], %46 {strides = array<i32>} : memref<1x1x1xf32, #tpu.memory_space<vmem>>, vector<1x1x1xf32>,
    return
  }
  func.func @transform_0(%arg0: i32, %arg1: i32) -> (i32, i32) {
    %c1_i32 = arith.constant 1 : i32
    %0 = arith.muli %arg0, %c1_i32 : i32
    %1 = arith.addi %0, %arg1 : i32
    %c0_i32 = arith.constant 0 : i32
    %c0_i32_0 = arith.constant 0 : i32
    return %1, %c0_i32 : i32, i32
  }
  func.func @transform_1(%arg0: i32, %arg1: i32) -> (i32, i32) {
    %c0_i32 = arith.constant 0 : i32
    %c0_i32_0 = arith.constant 0 : i32
    %c0_i32_1 = arith.constant 0 : i32
    return %c0_i32, %c0_i32_0 : i32, i32
  }
  func.func @transform_2(%arg0: i32, %arg1: i32) -> (i32, i32) {
    %c1_i32 = arith.constant 1 : i32
    %0 = arith.muli %arg0, %c1_i32 : i32
    %1 = arith.addi %0, %arg1 : i32
    %c0_i32 = arith.constant 0 : i32
    %c0_i32_0 = arith.constant 0 : i32
    return %1, %c0_i32 : i32, i32
  }
  func.func @transform_3(%arg0: i32, %arg1: i32) -> (i32, i32, i32) {
    %c0_i32 = arith.constant 0 : i32
    %c0_i32_0 = arith.constant 0 : i32
    %c0_i32_1 = arith.constant 0 : i32
    return %arg0, %c0_i32, %c0_i32_0 : i32, i32, i32
  }
}

</mosaic_0001>

<llo_original>
// kernel: tpu_custom_call.1
$region0: #{tpu_custom_call.1}
  #allocation0 [shape = 'u32[]', space=smem, size = 0x4, offset = 0x4, fixed_abs, tag = 'smem constant byte address 0x4 - core index']
  #allocation1 [shape = 'u32[72,128]{1,0:T(1,128)}', space=vmem, size = 0x9000, scoped, tag = 'internal scratch']
  %s0 = inlined_call_operand.vmem [shape: f32[8,128], index: 0, kind: input, shape index: {}]
  %s1 = inlined_call_operand.hbm [shape: f32[128,128], index: 1, kind: input, shape index: {}]
  %s2 = inlined_call_operand.vmem [shape: s32[8,1], index: 2, kind: input, shape index: {}]
  %s3 = inlined_call_operand.hbm [shape: f32[1,1,1], index: 3, kind: output, shape index: {}]
  %s4 = sld [smem:[#allocation0]]
  $region30: #{tpu_custom_call.1} parent=0
    _
  %s6 = ssub.s32 1, %s4
  %s7 = scalar_select 0, %s6, %s4
  $region1: #{tpu_custom_call.1} parent=0
    #allocation2 [shape = 'u8[65536]{0}', space=vmem, size = 0x10000, scoped, tag = 'input window, operand 1, single buffered']
    #allocation3 [shape = 's32[1]{0}', space=sflag, size = 0x4, scoped, tag = 'scoped memory for tpu_custom_call.1']
    #allocation4 [shape = 's32[1]{0}', space=sflag, size = 0x4, scoped, tag = 'scoped memory for tpu_custom_call.1']
    #allocation5 [shape = 'u8[512]{0}', space=vmem, size = 0x400, scoped, tag = 'output window, operand 0, single buffered']
    %8 = vsyncpa [#allocation3], 0
    %9 = vsyncpa [#allocation4], 0
    // Predicated region
    $region2: #{tpu_custom_call.1} parent=1 // pred_check
      _
    $region3: #{tpu_custom_call.1} parent=1 // pred_check_branch
      %11 = sbr.rel (0) target = $region5
    $region4: #{tpu_custom_call.1} parent=1 // pred_region
      %s12 = sadd.s32 0, 0
      %p13 = scmp.lt.s32.totalorder %s12, 0
      %s14 = scalar_select %p13, %s12, 0
      %s15 = smul.addr %s14, 8
      %s16 = scalar_lea.vmem %s0, %s15
      %s17 = sadd.s32 0, 0
    $region5: #{tpu_custom_call.1} parent=1 // pred_fallthru
      _
    // Predicated region
    $region6: #{tpu_custom_call.1} parent=1 // pred_check
      _
    $region7: #{tpu_custom_call.1} parent=1 // pred_check_branch
      %19 = sbr.rel (0) target = $region9
    $region8: #{tpu_custom_call.1} parent=1 // pred_region
      %21 = vsyncadd [#allocation3], 0
      %s22 = sshll.u32 %s1, 4
      %s23 = int_to_ptr.hbm [resolvable:$true] %s22
      %s24 = sshll.u32 [#allocation2], 4
      %s25 = int_to_ptr.vmem [resolvable:$true] %s24
      %30 = dma.hbm_to_vmem [thread:$0]  %s23, 2048, %s25, [#allocation3], 128, 128, 8
    $region9: #{tpu_custom_call.1} parent=1 // pred_fallthru
      _
    // Predicated region
    $region10: #{tpu_custom_call.1} parent=1 // pred_check
      _
    $region11: #{tpu_custom_call.1} parent=1 // pred_check_branch
      %32 = sbr.rel (0) target = $region13
    $region12: #{tpu_custom_call.1} parent=1 // pred_region
      %s33 = sadd.s32 0, 0
      %p34 = scmp.lt.s32.totalorder %s33, 0
      %s35 = scalar_select %p34, %s33, 0
      %s36 = smul.addr %s35, 8
      %s37 = scalar_lea.vmem %s2, %s36
      %s38 = sadd.s32 0, 0
    $region13: #{tpu_custom_call.1} parent=1 // pred_fallthru
      _
    // Predicated region
    $region14: #{tpu_custom_call.1} parent=1 // pred_check
      _
    $region15: #{tpu_custom_call.1} parent=1 // pred_check_branch
      %40 = sbr.rel (0) target = $region17
    $region16: #{tpu_custom_call.1} parent=1 // pred_region
      %42 = dma.done [#allocation3], 2048
    $region17: #{tpu_custom_call.1} parent=1 // pred_fallthru
      _
    %s43 = sadd.s32 0, 0
    %p44 = scmp.lt.s32.totalorder %s43, 0
    %s45 = scalar_select %p44, %s43, 0
    %s46 = smul.addr %s45, 8
    %s47 = scalar_lea.vmem %s0, %s46
    %s48 = sadd.s32 0, 0
    %p49 = scmp.lt.s32.totalorder %s48, 0
    %s50 = scalar_select %p49, %s48, 0
    %s51 = smul.addr %s50, 8
    %s52 = scalar_lea.vmem %s2, %s51
    %s53 = sadd.s32 0, 0
    %p54 = scmp.lt.s32.totalorder %s53, 0
    %s55 = scalar_select %p54, %s53, 0
    %s56 = smul.addr %s55, 8
    %s57 = scalar_lea.vmem %s0, %s56
    %s58 = sadd.s32 0, 0
    %s59 = sadd.s32 0, 0
    %p60 = scmp.lt.s32.totalorder %s59, 0
    %s61 = scalar_select %p60, %s59, 0
    %s62 = smul.addr %s61, 8
    %s63 = scalar_lea.vmem %s2, %s62
    %s64 = sadd.s32 0, 0
    %p65 = scmp.eq.s32.totalorder 0, 0
    // Predicated region
    $region18: #{tpu_custom_call.1} parent=1 // pred_check
      %p66 = pneg %p65
    $region19: #{tpu_custom_call.1} parent=1 // pred_check_branch
      %68 = sbr.rel (%p66) target = $region21
    $region20: #{tpu_custom_call.1} parent=1 // pred_region
      %vm69 = vcmask 0
      %70 = vst.msk [vmem:[#allocation5] sm:$0x1] %vm69, 0.0
    $region21: #{tpu_custom_call.1} parent=1 // pred_fallthru
      _
    %v71 = vld [vmem:[%s57] sm:$0xff]
    %v72 = vmul.f32 %v71, %v71
    %73 = vadd.xlane.f32.xlu0 %v72
    %v74 = vpop.xlane.xlu0 %73
    %v75 = vmax.f32 %v74, 1e-24
    %v76 = vrsqrt.pop %v75
    %v77 = vmul.f32 %v76, %v75
    %v78 = vmul.f32 %v77, %v76
    %v79 = vmul.f32 0.5, %v78
    %v80 = vsub.f32 1.5, %v79
    %v81 = vmul.f32 %v76, %v80
    %vm82 = vweird.f32 %v75
    %vm83 = vweird.f32 %v76
    %vm84 = vmor %vm82, %vm83
    %v85 = vsel %vm84, %v76, %v81
    %v86 = vmul.f32 %v71, %v85
    %v87 = vld [vmem:[#allocation2] sm:$0xff]
    %v88 = vld [vmem:[#allocation2 + $0x8] sm:$0xff]
    %v89 = vld [vmem:[#allocation2 + $0x10] sm:$0xff]
    %v90 = vld [vmem:[#allocation2 + $0x18] sm:$0xff]
    %v91 = vld [vmem:[#allocation2 + $0x20] sm:$0xff]
    %v92 = vld [vmem:[#allocation2 + $0x28] sm:$0xff]
    %v93 = vld [vmem:[#allocation2 + $0x30] sm:$0xff]
    %v94 = vld [vmem:[#allocation2 + $0x38] sm:$0xff]
    %v95 = vld [vmem:[#allocation2 + $0x40] sm:$0xff]
    %v96 = vld [vmem:[#allocation2 + $0x48] sm:$0xff]
    %v97 = vld [vmem:[#allocation2 + $0x50] sm:$0xff]
    %v98 = vld [vmem:[#allocation2 + $0x58] sm:$0xff]
    %v99 = vld [vmem:[#allocation2 + $0x60] sm:$0xff]
    %v100 = vld [vmem:[#allocation2 + $0x68] sm:$0xff]
    %v101 = vld [vmem:[#allocation2 + $0x70] sm:$0xff]
    %v102 = vld [vmem:[#allocation2 + $0x78] sm:$0xff]
    %103 = vmatpush.xpose.msra.mxu0 %v102
    %104 = vmatpush.xpose.msra.mxu0 %v101
    %105 = vmatpush.xpose.msra.mxu0 %v100
    %106 = vmatpush.xpose.msra.mxu0 %v99
    %107 = vmatpush.xpose.msra.mxu0 %v98
    %108 = vmatpush.xpose.msra.mxu0 %v97
    %109 = vmatpush.xpose.msra.mxu0 %v96
    %110 = vmatpush.xpose.msra.mxu0 %v95
    %111 = vmatpush.xpose.msra.mxu0 %v94
    %112 = vmatpush.xpose.msra.mxu0 %v93
    %113 = vmatpush.xpose.msra.mxu0 %v92
    %114 = vmatpush.xpose.msra.mxu0 %v91
    %115 = vmatpush.xpose.msra.mxu0 %v90
    %116 = vmatpush.xpose.msra.mxu0 %v89
    %117 = vmatpush.xpose.msra.mxu0 %v88
    %118 = vmatpush.xpose.msra.mxu0 %v87
    %119 = vmatmul.f32.gmra.mxu0 %v86
    %v120 = vpop.f32.mrf.mxu0
    %v121 = vadd.f32 0.0, %v120
    %122 = vdwg.mxu0
    %v123 = vmul.f32 %v121, 2.0
    %v124 = vlaneseq
    %v125 = vand.u32 %v124, 127
    %vm126 = vcmp.lt.s32.totalorder %v125, 8
    %v127 = vsel %vm126, %v123, -inf
    %128 = vmax.xlane.f32.xlu0 %v127
    %v129 = vpop.xlane.xlu0 %128
    %v130 = vsub.f32 %v127, %v129
    %v131 = vmul.f32 %v130, 1.442695
    %v132 = vpow.pop %v131
    %133 = vadd.xlane.f32.xlu0 %v132
    %v134 = vpop.xlane.xlu0 %133
    %v135 = vlog2.pop %v134
    %v136 = vmul.f32 %v135, 0.6931472
    %v137 = vadd.f32 %v136, %v129
    %v138 = vld [vmem:[%s63] sm:$0xff]
    %139 = vset.pattern.permute.xlu0 0
    %140 = vperm.xlu0 %139, %v138
    %v141 = vpop.permute.xlu0 %140
    %vm142 = vcmp.eq.s32.totalorder %v125, %v141
    %v143 = vsel %vm142, %v127, 0.0
    %144 = vadd.xlane.f32.xlu0 %v143
    %v145 = vpop.xlane.xlu0 %144
    %vm146 = vcmp.ge.s32.totalorder %v138, 0
    %v147 = vsub.f32 %v137, %v145
    %v148 = vsel %vm146, %v147, 0.0
    %v149 = vld [vmem:[#allocation5] sm:$0x1]
    %vm150 = vcmask 7168
    %v151 = vsel %vm150, %v148, 0.0
    %v152 = vrot.slane %v151, 4
    %v153 = vadd.f32 %v151, %v152
    %v154 = vrot.slane %v153, 2
    %v155 = vadd.f32 %v153, %v154
    %v156 = vrot.slane %v155, 1
    %v157 = vadd.f32 %v155, %v156
    %v158 = vadd.f32 %v149, %v157
    %vm159 = vcmask 0
    %160 = vst.msk [vmem:[#allocation5] sm:$0x1] %vm159, %v158
    // Predicated region
    $region22: #{tpu_custom_call.1} parent=1 // pred_check
      _
    $region23: #{tpu_custom_call.1} parent=1 // pred_check_branch
      %162 = sbr.rel (0) target = $region25
    $region24: #{tpu_custom_call.1} parent=1 // pred_region
      %164 = vsyncadd [#allocation4], 0
      %s166 = sshll.u32 [#allocation5], 4
      %s167 = int_to_ptr.vmem [resolvable:$true] %s166
      %s168 = sshll.u32 %s3, 4
      %s169 = int_to_ptr.hbm [resolvable:$true] %s168
      %171 = dma.vmem_to_hbm [thread:$0]  %s167, 16, %s169, [#allocation4]
    $region25: #{tpu_custom_call.1} parent=1 // pred_fallthru
      _
    // Predicated region
    $region26: #{tpu_custom_call.1} parent=1 // pred_check
      _
    $region27: #{tpu_custom_call.1} parent=1 // pred_check_branch
      %173 = sbr.rel (0) target = $region29
    $region28: #{tpu_custom_call.1} parent=1 // pred_region
      %175 = dma.done [#allocation4], 16
    $region29: #{tpu_custom_call.1} parent=1 // pred_fallthru
      _
    %176 = vsyncpa [#allocation3], 1
    %177 = vsyncpa [#allocation4], 1

</llo_original>
